<compile_context>
chip_gen: v7x
topology: tpu7x:2x2x1
jax: 0.10.0
libtpu: 0.0.40
codegen_flags: <defaults>
</compile_context>

<pallas_src>
import functools

import jax
import jax.numpy as jnp
from jax.experimental import pallas as pl
from jax.experimental.pallas import tpu as pltpu

KH = KW = 4
STRIDE = 2
PAD = 1
LRELU_SLOPE = 0.2
BN_EPS = 1e-5


def _round_up(x, m):
    return ((x + m - 1) // m) * m


def _vmem_capacity_bytes():
    try:
        return int(pltpu.get_tpu_info().vmem_capacity_bytes)
    except Exception:
        return 64 << 20          # conservative fallback (v7x per-core VMEM)


def _post(acc, after, dtype):
    """'after' activation on the f32 accumulator, then cast to the out dtype."""
    if after == "Tanh":
        acc = jnp.tanh(acc)
    elif after == "sigmoid":
        # overflow-safe sigmoid via tanh; stays on the EUP slot.
        acc = 0.5 * (jnp.tanh(0.5 * acc) + 1.0)
    return acc.astype(dtype)


def _kernel_2shift(xm_ref, xh_ref, w_ref, o_ref, *, wop, mrows, after):
    """Two shifted bf16 matmuls (kernel-row shift ph in {0,1}) per M tile.

    xm_ref: (1, mrows, K) bf16   row-groups hh = oh .. oh+toh-1  (K = 8*Cin)
    xh_ref: (1, wop,   K) bf16   halo row-group hh = oh+toh
    w_ref : (2, K, tn)    bf16   folded weights for ph = 0, 1
    o_ref : (1, mrows, tn)       lane-dense output tile
    """
    xm = xm_ref[0]
    xh = xh_ref[0]
    acc = jnp.dot(xm, w_ref[0], preferred_element_type=jnp.float32)
    split = mrows - wop
    if split == 0:                       # toh == 1: the ph=1 operand is the halo
        acc = acc + jnp.dot(xh, w_ref[1], preferred_element_type=jnp.float32)
        o_ref[0] = _post(acc, after, o_ref.dtype)
    else:
        # ph=1 operand = rows shifted down by one row group; no concatenate —
        # two dots into disjoint, 16-row-aligned halves of the accumulator.
        hi = acc[:split] + jnp.dot(xm[wop:], w_ref[1],
                                   preferred_element_type=jnp.float32)
        lo = acc[split:] + jnp.dot(xh, w_ref[1],
                                   preferred_element_type=jnp.float32)
        o_ref[0, :split, :] = _post(hi, after, o_ref.dtype)
        o_ref[0, split:, :] = _post(lo, after, o_ref.dtype)


def _kernel_fold(xm_ref, w_ref, o_ref, *, after):
    """Full 16-tap fold (small Cin): one dot with K = 16*Cin, no halo."""
    acc = jnp.dot(xm_ref[0], w_ref[...], preferred_element_type=jnp.float32)
    o_ref[0] = _post(acc, after, o_ref.dtype)


def cvi_forward(x, weight, before=None, after=False, *, target_rows=512,
                out_dtype=None, input_format="NCHW", output_format="NCHW"):
    """Pallas forward for Cvi.

    x:      (N, Cin, H, W) NCHW (or NHWC with input_format="NHWC"), float32
    weight: (Cout, Cin, 4, 4) PyTorch Conv2d layout, bias=False
    returns (N, Cout, H//2, W//2) (or NHWC with output_format="NHWC")
    """
    if before not in (None, "ReLU", "LReLU"):
        raise ValueError(f"unsupported before={before!r}")
    if after not in (False, None, "Tanh", "sigmoid", "BN"):
        raise ValueError(f"unsupported after={after!r}")

    if input_format == "NCHW":
        n, cin, h, w = x.shape
        xn = jnp.transpose(x, (0, 2, 3, 1))          # NHWC
    else:
        n, h, w, cin = x.shape
        xn = x
    cout, cin_w, kh_, kw_ = weight.shape
    assert (kh_, kw_) == (KH, KW) and cin_w == cin
    assert h % 2 == 0 and w % 2 == 0, "Cvi kernel assumes even H, W"
    ho, wo = h // 2, w // 2

    if out_dtype is None:
        # Tanh/sigmoid outputs live in [-1,1]; bf16 halves output HBM traffic.
        out_dtype = jnp.bfloat16 if after in ("Tanh", "sigmoid") else jnp.float32

    # ---- hoisted "before" activation (f32, matches PyTorch), then bf16 + pad.
    if before == "ReLU":
        xn = jnp.maximum(xn, 0.0)
    elif before == "LReLU":
        xn = jnp.where(xn >= 0.0, xn, LRELU_SLOPE * xn)
    xb = jnp.pad(xn.astype(jnp.bfloat16),
                 ((0, 0), (PAD, PAD), (PAD, PAD), (0, 0)))

    # ---- generation-aware sizing.
    vmem_cap = _vmem_capacity_bytes()
    vmem_limit = int(max(16 << 20, min(64 << 20, (vmem_cap * 5) // 8)))
    in_blk_budget = (2 << 20) if vmem_cap <= (64 << 20) else (4 << 20)

    coutp = _round_up(cout, 128)
    full_fold = (8 * cin) < 128            # small-Cin layers: one K=16*Cin dot

    if full_fold:
        # ---------------- full 16-tap fold path ----------------
        k = 16 * cin
        parts = [xb[:, kh:kh + STRIDE * ho:STRIDE, kw:kw + STRIDE * wo:STRIDE, :]
                 for kh in range(KH) for kw in range(KW)]
        xf = jnp.stack(parts, axis=3).reshape(n, ho * wo, k)   # (N, Ho*Wo, 16*Cin)
        mtotal = ho * wo
        rows_budget = max(16, ((in_blk_budget // (k * 2)) // 16) * 16)
        mrows = min(min(target_rows, rows_budget), _round_up(mtotal, 16))
        mrows = max(16, (mrows // 16) * 16)
        ntiles = -(-mtotal // mrows)
        xf = jnp.pad(xf, ((0, 0), (0, ntiles * mrows - mtotal), (0, 0)))

        wk = weight.transpose(2, 3, 1, 0).reshape(k, cout).astype(jnp.bfloat16)
        wk = jnp.pad(wk, ((0, 0), (0, coutp - cout)))          # lane-dense Cout

        tn = coutp if (k * coutp * 2) <= (8 << 20) else \
            (256 if coutp % 256 == 0 else 128)
        nco = coutp // tn
        grid = (n, ntiles, nco)            # cout innermost: input block resident

        kernel = functools.partial(_kernel_fold, after=after)
        out = pl.pallas_call(
            kernel,
            out_shape=jax.ShapeDtypeStruct((n, ntiles * mrows, coutp), out_dtype),
            grid=grid,
            in_specs=[
                pl.BlockSpec((1, mrows, k), lambda b, i, j: (b, i, 0)),
                pl.BlockSpec((k, tn), lambda b, i, j: (0, j)),
            ],
            out_specs=pl.BlockSpec((1, mrows, tn), lambda b, i, j: (b, i, j)),
            compiler_params=pltpu.CompilerParams(
                dimension_semantics=("parallel", "parallel", "arbitrary"),
                vmem_limit_bytes=vmem_limit),
        )(xf, wk)
        y = out[:, :mtotal, :cout].reshape(n, ho, wo, cout)
    else:
        # ---------------- 2-shift (ph in {0,1}) path ----------------
        k = 8 * cin
        wop = _round_up(wo, 16)            # cheap halo path + bf16 row packing
        parts = [xb[:, rh::STRIDE, kw:kw + STRIDE * wo:STRIDE, :]
                 for rh in range(2) for kw in range(KW)]
        xf = jnp.stack(parts, axis=3)                          # (N,Ho+1,Wo,8,Cin)
        xf = jnp.pad(xf, ((0, 0), (0, 0), (0, wop - wo), (0, 0), (0, 0)))
        xf = xf.reshape(n, (ho + 1) * wop, k)

        rows_budget = max(16, ((in_blk_budget // (k * 2)) // 16) * 16)
        toh = max(1, min(target_rows, rows_budget) // wop)
        toh = min(toh, ho)
        mrows = toh * wop                  # multiple of 16 (wop is)
        ntiles = -(-ho // toh)
        msd = (ntiles + 1) * mrows         # room for the last tile's halo group
        xf = jnp.pad(xf, ((0, 0), (0, msd - xf.shape[1]), (0, 0)))

        # weight (Cout,Cin,4,4) -> (ph, rh, kw, c, co) -> (2, 8*Cin, Coutp)
        wk = weight.reshape(cout, cin, 2, 2, KW)               # kh = 2*ph + rh
        wk = wk.transpose(2, 3, 4, 1, 0).reshape(2, k, cout).astype(jnp.bfloat16)
        wk = jnp.pad(wk, ((0, 0), (0, 0), (0, coutp - cout)))

        tn = coutp if (2 * k * coutp * 2) <= (8 << 20) else \
            (256 if coutp % 256 == 0 else 128)
        nco = coutp // tn
        grid = (n, ntiles, nco)            # cout innermost: input block resident

        kernel = functools.partial(_kernel_2shift, wop=wop, mrows=mrows, after=after)
        out = pl.pallas_call(
            kernel,
            out_shape=jax.ShapeDtypeStruct((n, ntiles * mrows, coutp), out_dtype),
            grid=grid,
            in_specs=[
                pl.BlockSpec((1, mrows, k), lambda b, i, j: (b, i, 0)),
                pl.BlockSpec((1, wop, k), lambda b, i, j: (b, (i + 1) * toh, 0)),
                pl.BlockSpec((2, k, tn), lambda b, i, j: (0, 0, j)),
            ],
            out_specs=pl.BlockSpec((1, mrows, tn), lambda b, i, j: (b, i, j)),
            compiler_params=pltpu.CompilerParams(
                dimension_semantics=("parallel", "parallel", "arbitrary"),
                vmem_limit_bytes=vmem_limit),
        )(xf, xf, wk)
        y = out[:, :ho * wop, :cout].reshape(n, ho, wop, cout)[:, :, :wo, :]

    if after == "BN":
        # TODO(synk): emit per-tile sum / sum-of-squares from the kernel and
        # finish mean/var in XLA to avoid this extra HBM pass over the output.
        yf = y.astype(jnp.float32)
        mean = jnp.mean(yf, axis=(0, 1, 2), keepdims=True)
        var = jnp.var(yf, axis=(0, 1, 2), keepdims=True)
        y = ((yf - mean) * jax.lax.rsqrt(var + BN_EPS)).astype(out_dtype)

    if output_format == "NCHW":
        y = jnp.transpose(y, (0, 3, 1, 2))
    return y


def _reference(x, weight, before, after):
    """Pure-JAX (f32) reference matching PyTorch semantics."""
    if before == "ReLU":
        x = jnp.maximum(x, 0.0)
    elif before == "LReLU":
        x = jnp.where(x >= 0.0, x, LRELU_SLOPE * x)
    y = jax.lax.conv_general_dilated(
        x, weight, window_strides=(STRIDE, STRIDE),
        padding=((PAD, PAD), (PAD, PAD)),
        dimension_numbers=("NCHW", "OIHW", "NCHW"))
    if after == "Tanh":
        y = jnp.tanh(y)
    elif after == "sigmoid":
        y = jax.nn.sigmoid(y)
    elif after == "BN":
        mean = jnp.mean(y, axis=(0, 2, 3), keepdims=True)
        var = jnp.var(y, axis=(0, 2, 3), keepdims=True)
        y = (y - mean) * jax.lax.rsqrt(var + BN_EPS)
    return y


if __name__ == "__main__":
    key = jax.random.PRNGKey(0)
    configs = [
        # (N, CIN, H, W, COUT, before, after, target_rows)
        (2, 4, 16, 16, 8, "LReLU", "Tanh", 512),    # full-fold path (8*Cin < 128)
        (2, 4, 16, 16, 8, "ReLU", "sigmoid", 512),
        (2, 4, 16, 16, 8, None, False, 512),
        (2, 16, 16, 16, 8, "LReLU", "Tanh", 512),   # 2-shift path, single tile
        (2, 16, 16, 16, 8, "LReLU", "Tanh", 32),    # 2-shift, multi-tile, split>0
        (2, 16, 16, 16, 8, "ReLU", "BN", 16),       # 2-shift, toh==1 (split==0)
        (1, 16, 8, 12, 4, None, "sigmoid", 512),    # non-pow2 Wo (Wo-padding path)
    ]
    for idx, (N, CIN, H, W, COUT, before, after, trs) in enumerate(configs):
        kx, kw_key, key = jax.random.split(key, 3)
        x = jax.random.normal(kx, (N, CIN, H, W), dtype=jnp.float32)
        # weights_init('gaussian'): normal(mean=0, std=0.02), bias=False
        weight = 0.02 * jax.random.normal(kw_key, (COUT, CIN, KH, KW),
                                          dtype=jnp.float32)
        y = jax.block_until_ready(
            cvi_forward(x, weight, before=before, after=after, target_rows=trs))
        y_ref = _reference(x, weight, before, after)
        assert y.shape == (N, COUT, H // 2, W // 2), (idx, y.shape)
        err = float(jnp.max(jnp.abs(y.astype(jnp.float32) - y_ref)))
        tol = 3e-2 if after == "BN" else 2e-2   # bf16 MXU operands, f32 accum
        assert err < tol, (idx, before, after, err)
    print("KERNEL_OK")
</pallas_src>

<mosaic_0001>
module attributes {stable_mosaic.version = 11 : i64} {
  func.func @_kernel_fold(%arg0: i32, %arg1: i32, %arg2: i32, %arg3: memref<1x64x64xbf16, #tpu.memory_space<vmem>>, %arg4: memref<64x128xbf16, #tpu.memory_space<vmem>>, %arg5: memref<1x64x128xbf16, #tpu.memory_space<vmem>>) attributes {dimension_semantics = [#tpu.dimension_semantics<parallel>, #tpu.dimension_semantics<parallel>, #tpu.dimension_semantics<arbitrary>], iteration_bounds = array<i64: 2, 1, 1>, scalar_prefetch = 0 : i64, scratch_operands = 0 : i64, tpu.core_type = #tpu.core_type<tc>, window_params = [{transform_indices = @transform_0, window_bounds = array<i64: 1, 64, 64>}, {transform_indices = @transform_1, window_bounds = array<i64: 64, 128>}, {transform_indices = @transform_2, window_bounds = array<i64: 1, 64, 128>}]} {
    %c0 = arith.constant 0 : index
    %c0_0 = arith.constant 0 : index
    %c0_1 = arith.constant 0 : index
    %0 = vector.load %arg3[%c0, %c0_0, %c0_1] : memref<1x64x64xbf16, #tpu.memory_space<vmem>>, vector<1x64x64xbf16>
    %1 = vector.shape_cast %0 : vector<1x64x64xbf16> to vector<64x64xbf16>
    %c0_2 = arith.constant 0 : index
    %c0_3 = arith.constant 0 : index
    %2 = vector.load %arg4[%c0_2, %c0_3] : memref<64x128xbf16, #tpu.memory_space<vmem>>, vector<64x128xbf16>
    %cst = arith.constant dense<0.000000e+00> : vector<64x128xf32>
    %3 = tpu.matmul %1, %2, %cst {dimension_numbers = #tpu.dot_dimension_numbers<[1], [0], [0], [1], [0, 0, 1, 1], [], []>} : vector<64x64xbf16>, vector<64x128xbf16>, vector<64x128xf32> -> vector<64x128xf32>
    %4 = math.tanh %3 : vector<64x128xf32>
    %5 = arith.truncf %4 : vector<64x128xf32> to vector<64x128xbf16>
    %c0_4 = arith.constant 0 : index
    %c0_5 = arith.constant 0 : index
    %c0_6 = arith.constant 0 : index
    %6 = vector.load %arg5[%c0_4, %c0_5, %c0_6] : memref<1x64x128xbf16, #tpu.memory_space<vmem>>, vector<1x64x128xbf16>
    %7 = vector.shape_cast %6 : vector<1x64x128xbf16> to vector<64x128xbf16>
    %8 = vector.shape_cast %5 : vector<64x128xbf16> to vector<1x64x128xbf16>
    tpu.vector_store %arg5[%c0_4, %c0_5, %c0_6], %8 {strides = array<i32>} : memref<1x64x128xbf16, #tpu.memory_space<vmem>>, vector<1x64x128xbf16>,
    return
  }
  func.func @transform_0(%arg0: i32, %arg1: i32, %arg2: i32) -> (i32, i32, i32) {
    %c0_i32 = arith.constant 0 : i32
    %c0_i32_0 = arith.constant 0 : i32
    return %arg0, %arg1, %c0_i32 : i32, i32, i32
  }
  func.func @transform_1(%arg0: i32, %arg1: i32, %arg2: i32) -> (i32, i32) {
    %c0_i32 = arith.constant 0 : i32
    %c0_i32_0 = arith.constant 0 : i32
    return %c0_i32, %arg2 : i32, i32
  }
  func.func @transform_2(%arg0: i32, %arg1: i32, %arg2: i32) -> (i32, i32, i32) {
    %c0_i32 = arith.constant 0 : i32
    return %arg0, %arg1, %arg2 : i32, i32, i32
  }
}

</mosaic_0001>

<llo_original>
// kernel: tpu_custom_call.1
$region0: #{tpu_custom_call.1}
  #allocation0 [shape = 'u32[]', space=smem, size = 0x4, offset = 0x4, fixed_abs, tag = 'smem constant byte address 0x4 - core index']
  #allocation1 [shape = 'u32[144,128]{1,0:T(1,128)}', space=vmem, size = 0x12000, scoped, tag = 'internal scratch']
  %s0 = inlined_call_operand.hbm [shape: bf16[2,64,64], index: 0, kind: input, shape index: {}]
  %s1 = inlined_call_operand.hbm [shape: bf16[64,128], index: 1, kind: input, shape index: {}]
  %s2 = inlined_call_operand.hbm [shape: bf16[2,64,128], index: 2, kind: output, shape index: {}]
  %s3 = sld [smem:[#allocation0]]
  $region49: #{tpu_custom_call.1} parent=0
    _
  %s5 = ssub.s32 1, %s3
  %s6 = scalar_select 0, %s5, %s3
  $region1: #{tpu_custom_call.1} parent=0
    #allocation2 [shape = 'u8[32768]{0}', space=vmem, size = 0x8000, scoped, tag = 'input window, operand 0']
    #allocation3 [shape = 's32[2]{0}', space=sflag, size = 0x8, scoped, tag = 'scoped memory for tpu_custom_call.1']
    #allocation4 [shape = 's32[2]{0}', space=sflag, size = 0x8, scoped, tag = 'scoped memory for tpu_custom_call.1']
    #allocation5 [shape = 'u8[16384]{0}', space=vmem, size = 0x4000, scoped, tag = 'input window, operand 1, single buffered']
    #allocation6 [shape = 's32[1]{0}', space=sflag, size = 0x4, scoped, tag = 'scoped memory for tpu_custom_call.1']
    #allocation7 [shape = 'u8[32768]{0}', space=vmem, size = 0x8000, scoped, tag = 'output window, operand 0']
    %7 = vsyncpa [#allocation3], 0
    %s8 = scalar_lea.sflag [#allocation3], 1
    %9 = vsyncpa %s8, 0
    %10 = vsyncpa [#allocation6], 0
    %11 = vsyncpa [#allocation4], 0
    %s12 = scalar_lea.sflag [#allocation4], 1
    %13 = vsyncpa %s12, 0
    loop: start=0, step=1, limit=4
    $region2: #{tpu_custom_call.1} parent=1 // loop_pre_header
      _
    $region3: #{tpu_custom_call.1} parent=1 // loop_header
      %s15 = sphi 0, %s19
      %p16 = scmp.ge.s32.totalorder %s15, 4
      %s22 = sphi 0, %s41
      %s23 = sphi 0, %s37
      %s24 = sphi 0, %s33
      %s25 = sphi 0, %s22
      %s26 = sphi 0, %s23
      %s27 = sphi 0, %s24
      %s28 = sphi 0, %s25
      %s29 = sphi 0, %s26
      %s30 = sphi 0, %s27
      %s46 = sphi 0, %s48
      %s49 = sphi 0, %s46
      %s50 = sphi 0, %s49
      %s66 = sphi 0, %s50
      %s72 = sphi 0, %s74
      %s75 = sphi 0, %s72
      %s76 = sphi 0, %s75
      %s92 = sphi 0, %s76
      %s102 = sphi 0, %s104
      %s105 = sphi 0, %s102
      %s106 = sphi 0, %s105
      %s122 = sphi 0, %s106
    $region4: #{tpu_custom_call.1} parent=1 // loop_header_branch
      %18 = sbr.rel (%p16) target = $region8
    $region5: #{tpu_custom_call.1} parent=1 // loop_body
      %s20 = ssub.s32 %s15, 1
      %s21 = ssub.s32 %s15, 2
      %s31 = sadd.s32 1, %s24
      %p32 = scmp.ge.s32.totalorder %s31, 1
      %s33 = scalar_select %p32, 0, %s31
      %s34 = sadd.s32 1, %s23
      %s35 = scalar_select %p32, %s34, %s23
      %p36 = scmp.ge.s32.totalorder %s35, 1
      %s37 = scalar_select %p36, 0, %s35
      %s38 = sadd.s32 1, %s22
      %s39 = scalar_select %p36, %s38, %s22
      %p40 = scmp.ge.s32.totalorder %s39, 2
      %s41 = scalar_select %p40, 0, %s39
      %s42 = ssub.s32 %s22, %s41
      %s43 = ssub.s32 %s23, %s37
      %s44 = sor.u32 %s42, %s43
      %p45 = scmp.eq.s32.totalorder %s44, 0
      %s47 = sadd.s32 %s46, 1
      %s48 = scalar_select %p45, %s46, %s47
      %p51 = pneg %p45
      %p52 = scmp.eq.s32.totalorder %s15, 1
      %p53 = por %p51, %p52
      %p54 = scmp.ne.s32.totalorder %s46, %s49
      %p55 = scmp.eq.s32.totalorder %s15, 0
      %p56 = por %p54, %p55
      %p57 = scmp.ne.s32.totalorder %s46, %s49
      %p58 = scmp.eq.s32.totalorder %s20, 1
      %p59 = por %p57, %p58
      %p60 = scmp.ne.s32.totalorder %s49, %s50
      %p61 = scmp.eq.s32.totalorder %s20, 0
      %p62 = por %p60, %p61
      %p63 = scmp.ne.s32.totalorder %s49, %s50
      %p64 = scmp.eq.s32.totalorder %s21, 1
      %p65 = por %p63, %p64
      %p67 = scmp.ne.s32.totalorder %s50, %s66
      %p68 = scmp.eq.s32.totalorder %s21, 0
      %p69 = por %p67, %p68
      %s70 = ssub.s32 %s24, %s33
      %p71 = scmp.eq.s32.totalorder %s70, 0
      %s73 = sadd.s32 %s72, 1
      %s74 = scalar_select %p71, %s72, %s73
      %p77 = pneg %p71
      %p78 = scmp.eq.s32.totalorder %s15, 1
      %p79 = por %p77, %p78
      %p80 = scmp.ne.s32.totalorder %s72, %s75
      %p81 = scmp.eq.s32.totalorder %s15, 0
      %p82 = por %p80, %p81
      %p83 = scmp.ne.s32.totalorder %s72, %s75
      %p84 = scmp.eq.s32.totalorder %s20, 1
      %p85 = por %p83, %p84
      %p86 = scmp.ne.s32.totalorder %s75, %s76
      %p87 = scmp.eq.s32.totalorder %s20, 0
      %p88 = por %p86, %p87
      %p89 = scmp.ne.s32.totalorder %s75, %s76
      %p90 = scmp.eq.s32.totalorder %s21, 1
      %p91 = por %p89, %p90
      %p93 = scmp.ne.s32.totalorder %s76, %s92
      %p94 = scmp.eq.s32.totalorder %s21, 0
      %p95 = por %p93, %p94
      %s96 = ssub.s32 %s22, %s41
      %s97 = ssub.s32 %s23, %s37
      %s98 = sor.u32 %s96, %s97
      %s99 = ssub.s32 %s24, %s33
      %s100 = sor.u32 %s98, %s99
      %p101 = scmp.eq.s32.totalorder %s100, 0
      %s103 = sadd.s32 %s102, 1
      %s104 = scalar_select %p101, %s102, %s103
      %p107 = pneg %p101
      %p108 = scmp.eq.s32.totalorder %s15, 1
      %p109 = por %p107, %p108
      %p110 = scmp.ne.s32.totalorder %s102, %s105
      %p111 = scmp.eq.s32.totalorder %s15, 0
      %p112 = por %p110, %p111
      %p113 = scmp.ne.s32.totalorder %s102, %s105
      %p114 = scmp.eq.s32.totalorder %s20, 1
      %p115 = por %p113, %p114
      %p116 = scmp.ne.s32.totalorder %s105, %s106
      %p117 = scmp.eq.s32.totalorder %s20, 0
      %p118 = por %p116, %p117
      %p119 = scmp.ne.s32.totalorder %s105, %s106
      %p120 = scmp.eq.s32.totalorder %s21, 1
      %p121 = por %p119, %p120
      %p123 = scmp.ne.s32.totalorder %s106, %s122
      %p124 = scmp.eq.s32.totalorder %s21, 0
      %p125 = por %p123, %p124
      %p126 = scmp.le.s32.totalorder 1, %s15
      %p127 = scmp.lt.s32.totalorder %s15, 3
      %p128 = pnand %p126, %p127
      %p129 = pneg %p128
      // Predicated region
      $region9: #{tpu_custom_call.1} parent=5 // pred_check
        _
      $region10: #{tpu_custom_call.1} parent=5 // pred_check_branch
        %131 = sbr.rel (%p128) target = $region12
      $region11: #{tpu_custom_call.1} parent=5 // pred_region
        %s132 = ssub.s32 %s15, 1
        // Predicated region
        $region13: #{tpu_custom_call.1} parent=11 // pred_check
          %p133 = pneg %p88
        $region14: #{tpu_custom_call.1} parent=11 // pred_check_branch
          %135 = sbr.rel (%p133) target = $region16
        $region15: #{tpu_custom_call.1} parent=11 // pred_region
          %s137 = ssub.s32 512, 512
          %138 = vsyncadd [#allocation6], %s137
          %s139 = smul.addr %s27, 64
          %s140 = scalar_lea.hbm %s1, %s139
          %s141 = sshll.u32 [#allocation5], 4
          %s142 = int_to_ptr.vmem [resolvable:$true] %s141
          %147 = dma.hbm_to_vmem [thread:$0]  %s140, 512, %s142, [#allocation6], 64, 64, 4
        $region16: #{tpu_custom_call.1} parent=11 // pred_fallthru
          _
      $region12: #{tpu_custom_call.1} parent=5 // pred_fallthru
        _
      %p148 = scmp.lt.s32.totalorder %s15, 2
      // Predicated region
      $region17: #{tpu_custom_call.1} parent=5 // pred_check
        %p149 = pneg %p148
      $region18: #{tpu_custom_call.1} parent=5 // pred_check_branch
        %151 = sbr.rel (%p149) target = $region20
      $region19: #{tpu_custom_call.1} parent=5 // pred_region
        // Predicated region
        $region21: #{tpu_custom_call.1} parent=19 // pred_check
          %p152 = pneg %p56
        $region22: #{tpu_custom_call.1} parent=19 // pred_check_branch
          %154 = sbr.rel (%p152) target = $region24
        $region23: #{tpu_custom_call.1} parent=19 // pred_region
          %s155 = sand.u32 %s46, 1
          %s156 = scalar_lea.sflag [#allocation3], %s155
          %s157 = sand.u32 %s46, 1
          %s158 = smul.addr %s157, 32
          %s159 = scalar_lea.vmem [#allocation2], %s158
          %s160 = smul.u32 8, %s23
          %s162 = ssub.s32 512, 512
          %163 = vsyncadd %s156, %s162
          %s164 = smul.addr %s22, 8
          %s165 = sadd.s32 %s160, %s164
          %s166 = smul.addr %s165, 64
          %s167 = scalar_lea.hbm %s0, %s166
          %s168 = sshll.u32 %s159, 4
          %s169 = int_to_ptr.vmem [resolvable:$true] %s168
          %174 = dma.hbm_to_vmem [thread:$0]  %s167, 512, %s169, %s156, 64, 64, 4
        $region24: #{tpu_custom_call.1} parent=19 // pred_fallthru
          _
      $region20: #{tpu_custom_call.1} parent=5 // pred_fallthru
        _
      %p175 = scmp.le.s32.totalorder 1, %s15
      %p176 = scmp.lt.s32.totalorder %s15, 3
      %p177 = pnand %p175, %p176
      %p178 = pneg %p177
      // Predicated region
      $region25: #{tpu_custom_call.1} parent=5 // pred_check
        _
      $region26: #{tpu_custom_call.1} parent=5 // pred_check_branch
        %180 = sbr.rel (%p177) target = $region28
      $region27: #{tpu_custom_call.1} parent=5 // pred_region
        %s181 = ssub.s32 %s15, 1
        %s182 = sand.u32 %s49, 1
        %s183 = scalar_lea.sflag [#allocation3], %s182
        %s184 = sand.u32 %s49, 1
        %s185 = smul.addr %s184, 32
        %s186 = scalar_lea.vmem [#allocation2], %s185
        // Predicated region
        $region29: #{tpu_custom_call.1} parent=27 // pred_check
          %p187 = pneg %p62
        $region30: #{tpu_custom_call.1} parent=27 // pred_check_branch
          %189 = sbr.rel (%p187) target = $region32
        $region31: #{tpu_custom_call.1} parent=27 // pred_region
          %190 = dma.done %s183, 512
        $region32: #{tpu_custom_call.1} parent=27 // pred_fallthru
          _
        // Predicated region
        $region33: #{tpu_custom_call.1} parent=27 // pred_check
          %p191 = pneg %p88
        $region34: #{tpu_custom_call.1} parent=27 // pred_check_branch
          %193 = sbr.rel (%p191) target = $region36
        $region35: #{tpu_custom_call.1} parent=27 // pred_region
          %194 = dma.done [#allocation6], 512
        $region36: #{tpu_custom_call.1} parent=27 // pred_fallthru
          _
        %s195 = sand.u32 %s49, 1
        %s196 = scalar_lea.sflag [#allocation3], %s195
        %s197 = sand.u32 %s49, 1
        %s198 = smul.addr %s197, 32
        %s199 = scalar_lea.vmem [#allocation2], %s198
        %p200 = pneg %p62
        %p201 = pneg %p59
        %p202 = pneg %p88
        %p203 = pneg %p85
        %p204 = pneg %p118
        %p205 = pneg %p115
        %s206 = sand.u32 %s105, 1
        %s207 = scalar_lea.sflag [#allocation4], %s206
        %s208 = sand.u32 %s105, 1
        %s209 = smul.addr %s208, 32
        %s210 = scalar_lea.vmem [#allocation7], %s209
        %s211 = smul.u32 8, %s26
        %s212 = smul.u32 8, %s26
        %v214 = vld [vmem:[%s186] sm:$0xf]
        %v215 = vld [vmem:[%s186 + $0x4] sm:$0xf]
        %v216 = vld [vmem:[%s186 + $0x8] sm:$0xf]
        %v217 = vld [vmem:[%s186 + $0xc] sm:$0xf]
        %v218 = vld [vmem:[%s186 + $0x10] sm:$0xf]
        %v219 = vld [vmem:[%s186 + $0x14] sm:$0xf]
        %v220 = vld [vmem:[%s186 + $0x18] sm:$0xf]
        %v221 = vld [vmem:[%s186 + $0x1c] sm:$0xf]
        %v222 = vld [vmem:[#allocation5] sm:$0xf]
        %v223 = vld [vmem:[#allocation5 + $0x4] sm:$0xf]
        %v224 = vld [vmem:[#allocation5 + $0x8] sm:$0xf]
        %v225 = vld [vmem:[#allocation5 + $0xc] sm:$0xf]
        %v226 = vld [vmem:[#allocation5 + $0x10] sm:$0xf]
        %v227 = vld [vmem:[#allocation5 + $0x14] sm:$0xf]
        %v228 = vld [vmem:[#allocation5 + $0x18] sm:$0xf]
        %v229 = vld [vmem:[#allocation5 + $0x1c] sm:$0xf]
        %v238 = vunpack.c.l.b16 %v214
        %v239 = vunpack.c.l.b16 %v215
        %v240 = vunpack.c.l.b16 %v216
        %v241 = vunpack.c.l.b16 %v217
        %v242 = vunpack.c.l.b16 %v218
        %v243 = vunpack.c.l.b16 %v219
        %v244 = vunpack.c.l.b16 %v220
        %v245 = vunpack.c.l.b16 %v221
        %v246 = vpack.c.b16 %v239, %v238
        %v247 = vpack.c.b16 %v241, %v240
        %v248 = vpack.c.b16 %v243, %v242
        %v249 = vpack.c.b16 %v245, %v244
        %v258 = vunpack.c.l.b16 %v222
        %v259 = vunpack.c.l.b16 %v223
        %v260 = vunpack.c.l.b16 %v224
        %v261 = vunpack.c.l.b16 %v225
        %v262 = vunpack.c.l.b16 %v226
        %v263 = vunpack.c.l.b16 %v227
        %v264 = vunpack.c.l.b16 %v228
        %v265 = vunpack.c.l.b16 %v229
        %v266 = vpack.c.b16 %v259, %v258
        %v267 = vpack.c.b16 %v261, %v260
        %v268 = vpack.c.b16 %v263, %v262
        %v269 = vpack.c.b16 %v265, %v264
        %vm274 = vcmask 523264
        %v276 = vsel %vm274, %v246, 0
        %v279 = vsel %vm274, %v247, 0
        %v282 = vsel %vm274, %v248, 0
        %v285 = vsel %vm274, %v249, 0
        %287 = vmatprep.subr.bf16.mxu0 0
        %288 = vmatpush1.bf16.msra.mxu0 %v266
        %289 = vmatprep.subr.bf16.mxu0 0
        %290 = vmatpush1.bf16.msra.mxu0 %v267
        %291 = vmatprep.subr.bf16.mxu0 0
        %292 = vmatpush1.bf16.msra.mxu0 %v268
        %293 = vmatprep.subr.bf16.mxu0 0
        %294 = vmatpush1.bf16.msra.mxu0 %v269
        %295 = vmatprep.subr.bf16.mxu0 0
        %296 = vmatpush1.bf16.msra.mxu0 0
        %297 = vmatprep.subr.bf16.mxu0 0
        %298 = vmatpush1.bf16.msra.mxu0 0
        %299 = vmatprep.subr.bf16.mxu0 0
        %300 = vmatpush1.bf16.msra.mxu0 0
        %301 = vmatprep.subr.bf16.mxu0 0
        %302 = vmatpush1.bf16.msra.mxu0 0
        %303 = vmatprep.subr.bf16.mxu0 0
        %304 = vmatpush1.bf16.msra.mxu0 0
        %305 = vmatprep.subr.bf16.mxu0 0
        %306 = vmatpush1.bf16.msra.mxu0 0
        %307 = vmatprep.subr.bf16.mxu0 0
        %308 = vmatpush1.bf16.msra.mxu0 0
        %309 = vmatprep.subr.bf16.mxu0 0
        %310 = vmatpush1.bf16.msra.mxu0 0
        %311 = vmatprep.subr.bf16.mxu0 0
        %312 = vmatpush1.bf16.msra.mxu0 0
        %313 = vmatprep.subr.bf16.mxu0 0
        %314 = vmatpush1.bf16.msra.mxu0 0
        %315 = vmatprep.subr.bf16.mxu0 0
        %316 = vmatpush1.bf16.msra.mxu0 0
        %317 = vmatprep.subr.bf16.mxu0 0
        %318 = vmatpush1.bf16.msra.mxu0 0
        %319 = vmatprep.mubr.bf16.mxu0 0
        %320 = vmatmul.mubr.bf16.gmra.mrb[0].mxu0 %v276
        %v321 = vpop.f32.mrb[0].mxu0
        %v322 = vadd.f32 0.0, %v321
        %v323 = vpop.f32.mrb[0].mxu0
        %v324 = vpop.f32.mrb[0].mxu0
        %v325 = vadd.f32 0.0, %v324
        %v326 = vpop.f32.mrb[0].mxu0
        %327 = vmatprep.mubr.bf16.mxu0 0
        %328 = vmatmul.mubr.bf16.gmra.mrb[0].mxu0 %v279
        %v329 = vpop.f32.mrb[0].mxu0
        %v330 = vadd.f32 0.0, %v329
        %v331 = vpop.f32.mrb[0].mxu0
        %v332 = vpop.f32.mrb[0].mxu0
        %v333 = vadd.f32 0.0, %v332
        %v334 = vpop.f32.mrb[0].mxu0
        %335 = vmatprep.mubr.bf16.mxu0 0
        %336 = vmatmul.mubr.bf16.gmra.mrb[0].mxu0 %v282
        %v337 = vpop.f32.mrb[0].mxu0
        %v338 = vadd.f32 0.0, %v337
        %v339 = vpop.f32.mrb[0].mxu0
        %v340 = vpop.f32.mrb[0].mxu0
        %v341 = vadd.f32 0.0, %v340
        %v342 = vpop.f32.mrb[0].mxu0
        %343 = vmatprep.mubr.bf16.mxu0 0
        %344 = vmatmul.mubr.bf16.gmra.mrb[0].mxu0 %v285
        %v345 = vpop.f32.mrb[0].mxu0
        %v346 = vadd.f32 0.0, %v345
        %v347 = vpop.f32.mrb[0].mxu0
        %v348 = vpop.f32.mrb[0].mxu0
        %v349 = vadd.f32 0.0, %v348
        %v350 = vpop.f32.mrb[0].mxu0
        %351 = vdwg.mxu0
        %v352 = vtanh.pop %v322
        %v353 = vtanh.pop %v325
        %v354 = vtanh.pop %v330
        %v355 = vtanh.pop %v333
        %v356 = vtanh.pop %v338
        %v357 = vtanh.pop %v341
        %v358 = vtanh.pop %v346
        %v359 = vtanh.pop %v349
        %v360 = vpack.c.bf16 %v353, %v352
        %v361 = vpack.c.bf16 %v355, %v354
        %v362 = vpack.c.bf16 %v357, %v356
        %v363 = vpack.c.bf16 %v359, %v358
        %v368 = vunpack.c.l.b16 %v360
        %v369 = vunpack.c.h.b16 %v360
        %v370 = vunpack.c.l.b16 %v361
        %v371 = vunpack.c.h.b16 %v361
        %v372 = vunpack.c.l.b16 %v362
        %v373 = vunpack.c.h.b16 %v362
        %v374 = vunpack.c.l.b16 %v363
        %v375 = vunpack.c.h.b16 %v363
        %v376 = vpack.c.b16 %v368, %v368
        %v377 = vpack.c.b16 %v369, %v369
        %v378 = vpack.c.b16 %v370, %v370
        %v379 = vpack.c.b16 %v371, %v371
        %v380 = vpack.c.b16 %v372, %v372
        %v381 = vpack.c.b16 %v373, %v373
        %v382 = vpack.c.b16 %v374, %v374
        %v383 = vpack.c.b16 %v375, %v375
        %392 = vst [vmem:[%s210] sm:$0xf] %v376
        %393 = vst [vmem:[%s210 + $0x4] sm:$0xf] %v377
        %394 = vst [vmem:[%s210 + $0x8] sm:$0xf] %v378
        %395 = vst [vmem:[%s210 + $0xc] sm:$0xf] %v379
        %396 = vst [vmem:[%s210 + $0x10] sm:$0xf] %v380
        %397 = vst [vmem:[%s210 + $0x14] sm:$0xf] %v381
        %398 = vst [vmem:[%s210 + $0x18] sm:$0xf] %v382
        %399 = vst [vmem:[%s210 + $0x1c] sm:$0xf] %v383
        %s400 = sand.u32 %s105, 1
        %s401 = scalar_lea.sflag [#allocation4], %s400
        %s402 = sand.u32 %s105, 1
        %s403 = smul.addr %s402, 32
        %s404 = scalar_lea.vmem [#allocation7], %s403
        // Predicated region
        $region37: #{tpu_custom_call.1} parent=27 // pred_check
          %p405 = pneg %p115
        $region38: #{tpu_custom_call.1} parent=27 // pred_check_branch
          %407 = sbr.rel (%p405) target = $region40
        $region39: #{tpu_custom_call.1} parent=27 // pred_region
          %s408 = smul.u32 8, %s26
          %s410 = ssub.s32 512, 512
          %411 = vsyncadd %s401, %s410
          %s412 = sadd.s32 %s27, %s408
          %s413 = smul.addr %s25, 8
          %s414 = sadd.s32 %s412, %s413
          %s415 = smul.addr %s414, 64
          %s416 = scalar_lea.hbm %s2, %s415
          %s417 = sshll.u32 %s404, 4
          %s418 = int_to_ptr.vmem [resolvable:$true] %s417
          %423 = dma.vmem_to_hbm [thread:$0]  %s418, 512, %s416, %s401, 64, 64, 4
        $region40: #{tpu_custom_call.1} parent=27 // pred_fallthru
          _
      $region28: #{tpu_custom_call.1} parent=5 // pred_fallthru
        _
      %p424 = scmp.le.s32.totalorder 2, %s15
      // Predicated region
      $region41: #{tpu_custom_call.1} parent=5 // pred_check
        %p425 = pneg %p424
      $region42: #{tpu_custom_call.1} parent=5 // pred_check_branch
        %427 = sbr.rel (%p425) target = $region44
      $region43: #{tpu_custom_call.1} parent=5 // pred_region
        %s428 = ssub.s32 %s15, 2
        // Predicated region
        $region45: #{tpu_custom_call.1} parent=43 // pred_check
          %p429 = pneg %p121
        $region46: #{tpu_custom_call.1} parent=43 // pred_check_branch
          %431 = sbr.rel (%p429) target = $region48
        $region47: #{tpu_custom_call.1} parent=43 // pred_region
          %s432 = sand.u32 %s106, 1
          %s433 = scalar_lea.sflag [#allocation4], %s432
          %s434 = sand.u32 %s106, 1
          %s435 = smul.addr %s434, 32
          %s436 = scalar_lea.vmem [#allocation7], %s435
          %437 = dma.done %s433, 512
        $region48: #{tpu_custom_call.1} parent=43 // pred_fallthru
          _
      $region44: #{tpu_custom_call.1} parent=5 // pred_fallthru
        _
    $region6: #{tpu_custom_call.1} parent=1 // loop_footer
      %s19 = sadd.s32 1, %s15
    $region7: #{tpu_custom_call.1} parent=1 // loop_footer_branch
      %14 = sbr.rel target = $region3
    $region8: #{tpu_custom_call.1} parent=1 // loop_exit
      _
    %438 = vsyncpa [#allocation3], 1
    %s439 = scalar_lea.sflag [#allocation3], 1
    %440 = vsyncpa %s439, 1
    %441 = vsyncpa [#allocation6], 1
    %442 = vsyncpa [#allocation4], 1
    %s443 = scalar_lea.sflag [#allocation4], 1
    %444 = vsyncpa %s443, 1

</llo_original>
